<compile_context>
chip_gen: v7x
topology: tpu7x:2x2x1
jax: 0.10.0
libtpu: 0.0.40
codegen_flags: <defaults>
</compile_context>

<pallas_src>
import jax
import jax.numpy as jnp
from jax.experimental import pallas as pl
from jax.experimental.pallas import tpu as pltpu

HIDDEN = 64
LANE = 128             # hidden dim padded to a lane multiple (weights only)
MAX_BATCH_TILE = 512   # rows per grid step (multiple of 8)
MIN_PALLAS_BATCH = 64  # below this, plain jnp beats kernel-launch overhead


def _round_up(x, m):
    return ((x + m - 1) // m) * m


def _choose_batch_tile(B):
    # Keep the grid >= 2 steps when possible so the 'parallel' batch axis can
    # shard across both TensorCores on v7x; cap the tile at MAX_BATCH_TILE.
    half = _round_up(max(-(-B // 2), 1), 8)
    return max(8, min(MAX_BATCH_TILE, half))


def _fwd_dyn_kernel(s_ref, a_ref, w1s_ref, w1a_ref, b1_ref, w2_ref, b2_ref,
                    out_ref):
    # Layer 1: h = relu(state @ W1_s + action @ W1_a + b1)
    # bf16 operands, f32 accumulation; bias + ReLU on the f32 accumulator.
    h = jnp.dot(s_ref[...], w1s_ref[...], preferred_element_type=jnp.float32)
    h = h + jnp.dot(a_ref[...], w1a_ref[...],
                    preferred_element_type=jnp.float32)
    h = jnp.maximum(h + b1_ref[...], 0.0)
    # Layer 2: next_state_pred = h @ W2 + b2 (bf16 MXU pass, f32 accumulate).
    out = jnp.dot(h.astype(w2_ref.dtype), w2_ref[...],
                  preferred_element_type=jnp.float32) + b2_ref[...]
    out_ref[...] = out.astype(out_ref.dtype)


def init_params(state_size, action_size, hidden=HIDDEN, seed=42):
    """Deterministic synthetic parameter init (PyTorch-Linear-like scaling).

    Returns *unpadded* f32 parameters:
      w1: [S+A, H], b1: [1, H], w2: [H, S], b2: [1, S]
    """
    k = jax.random.PRNGKey(seed)
    k1, k2, k3, k4 = jax.random.split(k, 4)
    in1 = state_size + action_size
    s1 = 1.0 / jnp.sqrt(jnp.float32(in1))
    s2 = 1.0 / jnp.sqrt(jnp.float32(hidden))
    return {
        "w1": jax.random.uniform(k1, (in1, hidden), jnp.float32, -s1, s1),
        "b1": jax.random.uniform(k2, (1, hidden), jnp.float32, -s1, s1),
        "w2": jax.random.uniform(k3, (hidden, state_size), jnp.float32, -s2, s2),
        "b2": jax.random.uniform(k4, (1, state_size), jnp.float32, -s2, s2),
    }


def prepare_params(params, state_size):
    """Split W1 by the (state, action) concat, pad hidden to 128 lanes, bf16.

    Padded b1 lanes are zero (ReLU(0)=0) and padded w2 rows are zero, so the
    hidden-dim padding is exact.  Weights are bf16 (MXU operands); biases stay
    f32 (added to the f32 accumulator).
    """
    w1, b1, w2, b2 = params["w1"], params["b1"], params["w2"], params["b2"]
    K, H = w1.shape
    S_out = w2.shape[1]
    HP = _round_up(H, LANE)
    w1p = jnp.pad(w1, ((0, 0), (0, HP - H)))            # [K, HP]
    return {
        "w1_s": w1p[:state_size].astype(jnp.bfloat16),  # [S, HP]
        "w1_a": w1p[state_size:].astype(jnp.bfloat16),  # [A, HP]
        "b1": jnp.pad(b1, ((0, 0), (0, HP - H))),       # [1, HP] f32
        "w2": jnp.pad(w2, ((0, HP - H), (0, 0))).astype(jnp.bfloat16),  # [HP, S]
        "b2": b2,                                       # [1, S]  f32
    }


def forward_dynamic(state, action, prepared, *, force_pallas=False):
    """state: [B, S] f32, action: [B, A] f32 -> predicted next state [B, S] f32."""
    w1s, w1a, b1, w2, b2 = (prepared["w1_s"], prepared["w1_a"], prepared["b1"],
                            prepared["w2"], prepared["b2"])
    B, S = state.shape
    A = action.shape[1]
    HP = w1s.shape[1]
    S_out = w2.shape[1]

    s_bf = state.astype(jnp.bfloat16)
    a_bf = action.astype(jnp.bfloat16)

    if B < MIN_PALLAS_BATCH and not force_pallas:
        # Small-batch fast path: same math / precision, no kernel launch.
        h = jnp.dot(s_bf, w1s, preferred_element_type=jnp.float32)
        h = h + jnp.dot(a_bf, w1a, preferred_element_type=jnp.float32)
        h = jnp.maximum(h + b1, 0.0)
        return jnp.dot(h.astype(jnp.bfloat16), w2,
                       preferred_element_type=jnp.float32) + b2

    # Batch tiling: pad batch so the grid divides evenly; no lane padding of
    # the streamed activations or of the output.
    tb = _choose_batch_tile(B)
    Bp = _round_up(B, tb)
    if Bp != B:
        s_bf = jnp.pad(s_bf, ((0, Bp - B), (0, 0)))
        a_bf = jnp.pad(a_bf, ((0, Bp - B), (0, 0)))
    grid = (Bp // tb,)

    out = pl.pallas_call(
        _fwd_dyn_kernel,
        out_shape=jax.ShapeDtypeStruct((Bp, S_out), jnp.float32),
        grid=grid,
        in_specs=[
            pl.BlockSpec((tb, S), lambda i: (i, 0)),    # state : streamed
            pl.BlockSpec((tb, A), lambda i: (i, 0)),    # action: streamed
            pl.BlockSpec((S, HP), lambda i: (0, 0)),    # w1_s  : VMEM-resident
            pl.BlockSpec((A, HP), lambda i: (0, 0)),    # w1_a
            pl.BlockSpec((1, HP), lambda i: (0, 0)),    # b1
            pl.BlockSpec((HP, S_out), lambda i: (0, 0)),  # w2
            pl.BlockSpec((1, S_out), lambda i: (0, 0)),   # b2
        ],
        out_specs=pl.BlockSpec((tb, S_out), lambda i: (i, 0)),
        compiler_params=pltpu.CompilerParams(
            dimension_semantics=("parallel",)),
    )(s_bf, a_bf, w1s, w1a, b1, w2, b2)

    return out[:B]


if __name__ == "__main__":
    state_size, action_size, batch = 32, 8, 8

    key = jax.random.PRNGKey(0)
    ks, ka = jax.random.split(key)
    state = jax.random.normal(ks, (batch, state_size), jnp.float32)
    action = jax.random.normal(ka, (batch, action_size), jnp.float32)

    params = init_params(state_size, action_size)
    prepared = prepare_params(params, state_size)

    # Exercise the Pallas kernel path explicitly (small demo batch would
    # otherwise take the fast path).
    out_pallas = forward_dynamic(state, action, prepared, force_pallas=True)
    out_pallas = jax.block_until_ready(out_pallas)

    # Also exercise the auto (small-batch) path.
    out_fast = jax.block_until_ready(forward_dynamic(state, action, prepared))

    # Pure-JAX f32 reference (unpadded params).  bf16 operands + f32 accum in
    # the kernel -> loosened tolerance.
    x = jnp.concatenate([state, action], axis=-1)
    h_ref = jnp.maximum(x @ params["w1"] + params["b1"], 0.0)
    ref = h_ref @ params["w2"] + params["b2"]

    assert out_pallas.shape == (batch, state_size)
    assert jnp.allclose(out_pallas, ref, atol=3e-2, rtol=3e-2)
    assert jnp.allclose(out_fast, ref, atol=3e-2, rtol=3e-2)

    print("KERNEL_OK")
</pallas_src>

<mosaic_0001>
module attributes {stable_mosaic.version = 11 : i64} {
  func.func @_fwd_dyn_kernel(%arg0: i32, %arg1: memref<8x32xbf16, #tpu.memory_space<vmem>>, %arg2: memref<8x8xbf16, #tpu.memory_space<vmem>>, %arg3: memref<32x128xbf16, #tpu.memory_space<vmem>>, %arg4: memref<8x128xbf16, #tpu.memory_space<vmem>>, %arg5: memref<1x128xf32, #tpu.memory_space<vmem>>, %arg6: memref<128x32xbf16, #tpu.memory_space<vmem>>, %arg7: memref<1x32xf32, #tpu.memory_space<vmem>>, %arg8: memref<8x32xf32, #tpu.memory_space<vmem>>) attributes {dimension_semantics = [#tpu.dimension_semantics<parallel>], iteration_bounds = array<i64: 1>, scalar_prefetch = 0 : i64, scratch_operands = 0 : i64, tpu.core_type = #tpu.core_type<tc>, window_params = [{transform_indices = @transform_0, window_bounds = array<i64: 8, 32>}, {transform_indices = @transform_1, window_bounds = array<i64: 8, 8>}, {pipeline_mode = #tpu.pipeline_mode<synchronous>, transform_indices = @transform_2, window_bounds = array<i64: 32, 128>}, {pipeline_mode = #tpu.pipeline_mode<synchronous>, transform_indices = @transform_3, window_bounds = array<i64: 8, 128>}, {pipeline_mode = #tpu.pipeline_mode<synchronous>, transform_indices = @transform_4, window_bounds = array<i64: 1, 128>}, {pipeline_mode = #tpu.pipeline_mode<synchronous>, transform_indices = @transform_5, window_bounds = array<i64: 128, 32>}, {pipeline_mode = #tpu.pipeline_mode<synchronous>, transform_indices = @transform_6, window_bounds = array<i64: 1, 32>}, {transform_indices = @transform_7, window_bounds = array<i64: 8, 32>}]} {
    %c0 = arith.constant 0 : index
    %c0_0 = arith.constant 0 : index
    %0 = vector.load %arg1[%c0, %c0_0] : memref<8x32xbf16, #tpu.memory_space<vmem>>, vector<8x32xbf16>
    %c0_1 = arith.constant 0 : index
    %c0_2 = arith.constant 0 : index
    %1 = vector.load %arg3[%c0_1, %c0_2] : memref<32x128xbf16, #tpu.memory_space<vmem>>, vector<32x128xbf16>
    %cst = arith.constant dense<0.000000e+00> : vector<8x128xf32>
    %2 = tpu.matmul %0, %1, %cst {dimension_numbers = #tpu.dot_dimension_numbers<[1], [0], [0], [1], [0, 0, 1, 1], [], []>} : vector<8x32xbf16>, vector<32x128xbf16>, vector<8x128xf32> -> vector<8x128xf32>
    %c0_3 = arith.constant 0 : index
    %c0_4 = arith.constant 0 : index
    %3 = vector.load %arg2[%c0_3, %c0_4] : memref<8x8xbf16, #tpu.memory_space<vmem>>, vector<8x8xbf16>
    %c0_5 = arith.constant 0 : index
    %c0_6 = arith.constant 0 : index
    %4 = vector.load %arg4[%c0_5, %c0_6] : memref<8x128xbf16, #tpu.memory_space<vmem>>, vector<8x128xbf16>
    %cst_7 = arith.constant dense<0.000000e+00> : vector<8x128xf32>
    %5 = tpu.matmul %3, %4, %cst_7 {dimension_numbers = #tpu.dot_dimension_numbers<[1], [0], [0], [1], [0, 0, 1, 1], [], []>} : vector<8x8xbf16>, vector<8x128xbf16>, vector<8x128xf32> -> vector<8x128xf32>
    %6 = arith.addf %2, %5 : vector<8x128xf32>
    %c0_8 = arith.constant 0 : index
    %c0_9 = arith.constant 0 : index
    %7 = vector.load %arg5[%c0_8, %c0_9] : memref<1x128xf32, #tpu.memory_space<vmem>>, vector<1x128xf32>
    %8 = vector.broadcast %7 : vector<1x128xf32> to vector<8x128xf32>
    %9 = arith.addf %6, %8 : vector<8x128xf32>
    %cst_10 = arith.constant 0.000000e+00 : f32
    %10 = vector.broadcast %cst_10 : f32 to vector<8x128xf32>
    %11 = arith.maximumf %9, %10 : vector<8x128xf32>
    %12 = arith.truncf %11 : vector<8x128xf32> to vector<8x128xbf16>
    %c0_11 = arith.constant 0 : index
    %c0_12 = arith.constant 0 : index
    %13 = vector.load %arg6[%c0_11, %c0_12] : memref<128x32xbf16, #tpu.memory_space<vmem>>, vector<128x32xbf16>
    %cst_13 = arith.constant dense<0.000000e+00> : vector<8x32xf32>
    %14 = tpu.matmul %12, %13, %cst_13 {dimension_numbers = #tpu.dot_dimension_numbers<[1], [0], [0], [1], [0, 0, 1, 1], [], []>} : vector<8x128xbf16>, vector<128x32xbf16>, vector<8x32xf32> -> vector<8x32xf32>
    %c0_14 = arith.constant 0 : index
    %c0_15 = arith.constant 0 : index
    %15 = vector.load %arg7[%c0_14, %c0_15] : memref<1x32xf32, #tpu.memory_space<vmem>>, vector<1x32xf32>
    %16 = vector.broadcast %15 : vector<1x32xf32> to vector<8x32xf32>
    %17 = arith.addf %14, %16 : vector<8x32xf32>
    %c0_16 = arith.constant 0 : index
    %c0_17 = arith.constant 0 : index
    %18 = vector.load %arg8[%c0_16, %c0_17] : memref<8x32xf32, #tpu.memory_space<vmem>>, vector<8x32xf32>
    tpu.vector_store %arg8[%c0_16, %c0_17], %17 {strides = array<i32>} : memref<8x32xf32, #tpu.memory_space<vmem>>, vector<8x32xf32>,
    return
  }
  func.func @transform_0(%arg0: i32) -> (i32, i32) {
    %c0_i32 = arith.constant 0 : i32
    %c0_i32_0 = arith.constant 0 : i32
    return %arg0, %c0_i32 : i32, i32
  }
  func.func @transform_1(%arg0: i32) -> (i32, i32) {
    %c0_i32 = arith.constant 0 : i32
    %c0_i32_0 = arith.constant 0 : i32
    return %arg0, %c0_i32 : i32, i32
  }
  func.func @transform_2(%arg0: i32) -> (i32, i32) {
    %c0_i32 = arith.constant 0 : i32
    %c0_i32_0 = arith.constant 0 : i32
    %c0_i32_1 = arith.constant 0 : i32
    return %c0_i32, %c0_i32_0 : i32, i32
  }
  func.func @transform_3(%arg0: i32) -> (i32, i32) {
    %c0_i32 = arith.constant 0 : i32
    %c0_i32_0 = arith.constant 0 : i32
    %c0_i32_1 = arith.constant 0 : i32
    return %c0_i32, %c0_i32_0 : i32, i32
  }
  func.func @transform_4(%arg0: i32) -> (i32, i32) {
    %c0_i32 = arith.constant 0 : i32
    %c0_i32_0 = arith.constant 0 : i32
    %c0_i32_1 = arith.constant 0 : i32
    return %c0_i32, %c0_i32_0 : i32, i32
  }
  func.func @transform_5(%arg0: i32) -> (i32, i32) {
    %c0_i32 = arith.constant 0 : i32
    %c0_i32_0 = arith.constant 0 : i32
    %c0_i32_1 = arith.constant 0 : i32
    return %c0_i32, %c0_i32_0 : i32, i32
  }
  func.func @transform_6(%arg0: i32) -> (i32, i32) {
    %c0_i32 = arith.constant 0 : i32
    %c0_i32_0 = arith.constant 0 : i32
    %c0_i32_1 = arith.constant 0 : i32
    return %c0_i32, %c0_i32_0 : i32, i32
  }
  func.func @transform_7(%arg0: i32) -> (i32, i32) {
    %c0_i32 = arith.constant 0 : i32
    %c0_i32_0 = arith.constant 0 : i32
    return %arg0, %c0_i32 : i32, i32
  }
}

</mosaic_0001>

<llo_original>
// kernel: tpu_custom_call.1
$region0: #{tpu_custom_call.1}
  #allocation0 [shape = 'u32[]', space=smem, size = 0x4, offset = 0x4, fixed_abs, tag = 'smem constant byte address 0x4 - core index']
  #allocation1 [shape = 'u32[144,128]{1,0:T(1,128)}', space=vmem, size = 0x12000, scoped, tag = 'internal scratch']
  %s0 = inlined_call_operand.vmem [shape: bf16[8,32], index: 0, kind: input, shape index: {}]
  %s1 = inlined_call_operand.vmem [shape: bf16[8,8], index: 1, kind: input, shape index: {}]
  %s2 = inlined_call_operand.vmem [shape: bf16[32,128], index: 2, kind: input, shape index: {}]
  %s3 = inlined_call_operand.vmem [shape: bf16[8,128], index: 3, kind: input, shape index: {}]
  %s4 = inlined_call_operand.vmem [shape: f32[1,128], index: 4, kind: input, shape index: {}]
  %s5 = inlined_call_operand.vmem [shape: bf16[128,32], index: 5, kind: input, shape index: {}]
  %s6 = inlined_call_operand.vmem [shape: f32[1,32], index: 6, kind: input, shape index: {}]
  %s7 = inlined_call_operand.hbm [shape: f32[8,32], index: 7, kind: output, shape index: {}]
  %s8 = sld [smem:[#allocation0]]
  $region38: #{tpu_custom_call.1} parent=0
    _
  %s10 = ssub.s32 1, %s8
  %s11 = scalar_select 0, %s10, %s8
  $region1: #{tpu_custom_call.1} parent=0
    #allocation2 [shape = 'u8[4096]{0}', space=vmem, size = 0x1000, scoped, tag = 'output window, operand 0, single buffered']
    #allocation3 [shape = 's32[1]{0}', space=sflag, size = 0x4, scoped, tag = 'scoped memory for tpu_custom_call.1']
    %12 = vsyncpa [#allocation3], 0
    // Predicated region
    $region2: #{tpu_custom_call.1} parent=1 // pred_check
      _
    $region3: #{tpu_custom_call.1} parent=1 // pred_check_branch
      %14 = sbr.rel (0) target = $region5
    $region4: #{tpu_custom_call.1} parent=1 // pred_region
      _
    $region5: #{tpu_custom_call.1} parent=1 // pred_fallthru
      _
    // Predicated region
    $region6: #{tpu_custom_call.1} parent=1 // pred_check
      _
    $region7: #{tpu_custom_call.1} parent=1 // pred_check_branch
      %16 = sbr.rel (0) target = $region9
    $region8: #{tpu_custom_call.1} parent=1 // pred_region
      _
    $region9: #{tpu_custom_call.1} parent=1 // pred_fallthru
      _
    // Predicated region
    $region10: #{tpu_custom_call.1} parent=1 // pred_check
      _
    $region11: #{tpu_custom_call.1} parent=1 // pred_check_branch
      %18 = sbr.rel (0) target = $region13
    $region12: #{tpu_custom_call.1} parent=1 // pred_region
      _
    $region13: #{tpu_custom_call.1} parent=1 // pred_fallthru
      _
    // Predicated region
    $region14: #{tpu_custom_call.1} parent=1 // pred_check
      _
    $region15: #{tpu_custom_call.1} parent=1 // pred_check_branch
      %20 = sbr.rel (0) target = $region17
    $region16: #{tpu_custom_call.1} parent=1 // pred_region
      _
    $region17: #{tpu_custom_call.1} parent=1 // pred_fallthru
      _
    // Predicated region
    $region18: #{tpu_custom_call.1} parent=1 // pred_check
      _
    $region19: #{tpu_custom_call.1} parent=1 // pred_check_branch
      %22 = sbr.rel (0) target = $region21
    $region20: #{tpu_custom_call.1} parent=1 // pred_region
      _
    $region21: #{tpu_custom_call.1} parent=1 // pred_fallthru
      _
    // Predicated region
    $region22: #{tpu_custom_call.1} parent=1 // pred_check
      _
    $region23: #{tpu_custom_call.1} parent=1 // pred_check_branch
      %24 = sbr.rel (0) target = $region25
    $region24: #{tpu_custom_call.1} parent=1 // pred_region
      _
    $region25: #{tpu_custom_call.1} parent=1 // pred_fallthru
      _
    // Predicated region
    $region26: #{tpu_custom_call.1} parent=1 // pred_check
      _
    $region27: #{tpu_custom_call.1} parent=1 // pred_check_branch
      %26 = sbr.rel (0) target = $region29
    $region28: #{tpu_custom_call.1} parent=1 // pred_region
      _
    $region29: #{tpu_custom_call.1} parent=1 // pred_fallthru
      _
    %v28 = vld [vmem:[%s0] sm:$0xf]
    %v29 = vld [vmem:[%s2] sm:$0xf]
    %v30 = vld [vmem:[%s2 + $0x4] sm:$0xf]
    %v31 = vld [vmem:[%s2 + $0x8] sm:$0xf]
    %v32 = vld [vmem:[%s2 + $0xc] sm:$0xf]
    %v33 = vld [vmem:[%s1] sm:$0xf]
    %v34 = vld [vmem:[%s3] sm:$0xf]
    %vm35 = vcmask 64512
    %v37 = vsel %vm35, %v33, 0
    %vm39 = vcmask 1043456
    %v41 = vsel %vm39, %v34, 0
    %43 = vmatprep.subr.bf16.mxu0 0
    %44 = vmatpush1.bf16.msra.mxu0 %v41
    %45 = vmatprep.subr.bf16.mxu0 0
    %46 = vmatpush1.bf16.msra.mxu0 0
    %47 = vmatprep.subr.bf16.mxu0 0
    %48 = vmatpush1.bf16.msra.mxu0 0
    %49 = vmatprep.subr.bf16.mxu0 0
    %50 = vmatpush1.bf16.msra.mxu0 0
    %51 = vmatprep.subr.bf16.mxu0 0
    %52 = vmatpush1.bf16.msra.mxu0 0
    %53 = vmatprep.subr.bf16.mxu0 0
    %54 = vmatpush1.bf16.msra.mxu0 0
    %55 = vmatprep.subr.bf16.mxu0 0
    %56 = vmatpush1.bf16.msra.mxu0 0
    %57 = vmatprep.subr.bf16.mxu0 0
    %58 = vmatpush1.bf16.msra.mxu0 0
    %59 = vmatprep.subr.bf16.mxu0 0
    %60 = vmatpush1.bf16.msra.mxu0 0
    %61 = vmatprep.subr.bf16.mxu0 0
    %62 = vmatpush1.bf16.msra.mxu0 0
    %63 = vmatprep.subr.bf16.mxu0 0
    %64 = vmatpush1.bf16.msra.mxu0 0
    %65 = vmatprep.subr.bf16.mxu0 0
    %66 = vmatpush1.bf16.msra.mxu0 0
    %67 = vmatprep.subr.bf16.mxu0 0
    %68 = vmatpush1.bf16.msra.mxu0 0
    %69 = vmatprep.subr.bf16.mxu0 0
    %70 = vmatpush1.bf16.msra.mxu0 0
    %71 = vmatprep.subr.bf16.mxu0 0
    %72 = vmatpush1.bf16.msra.mxu0 0
    %73 = vmatprep.subr.bf16.mxu0 0
    %74 = vmatpush1.bf16.msra.mxu0 0
    %75 = vmatprep.mubr.bf16.mxu0 0
    %76 = vmatmul.mubr.bf16.gmra.mrb[0].mxu0 %v37
    %v77 = vpop.f32.mrb[0].mxu0
    %v78 = vadd.f32 0.0, %v77
    %v79 = vpop.f32.mrb[0].mxu0
    %v80 = vpop.f32.mrb[0].mxu0
    %v81 = vpop.f32.mrb[0].mxu0
    %82 = vdwg.mxu0
    %v87 = vunpack.c.l.b16 %v29
    %v88 = vunpack.c.l.b16 %v30
    %v89 = vunpack.c.l.b16 %v31
    %v90 = vunpack.c.l.b16 %v32
    %v91 = vpack.c.b16 %v88, %v87
    %v92 = vpack.c.b16 %v90, %v89
    %vm95 = vcmask 261120
    %v97 = vsel %vm95, %v28, 0
    %99 = vmatprep.subr.bf16.mxu0 0
    %100 = vmatpush1.bf16.msra.mxu0 %v91
    %101 = vmatprep.subr.bf16.mxu0 0
    %102 = vmatpush1.bf16.msra.mxu0 %v92
    %103 = vmatprep.subr.bf16.mxu0 0
    %104 = vmatpush1.bf16.msra.mxu0 0
    %105 = vmatprep.subr.bf16.mxu0 0
    %106 = vmatpush1.bf16.msra.mxu0 0
    %107 = vmatprep.subr.bf16.mxu0 0
    %108 = vmatpush1.bf16.msra.mxu0 0
    %109 = vmatprep.subr.bf16.mxu0 0
    %110 = vmatpush1.bf16.msra.mxu0 0
    %111 = vmatprep.subr.bf16.mxu0 0
    %112 = vmatpush1.bf16.msra.mxu0 0
    %113 = vmatprep.subr.bf16.mxu0 0
    %114 = vmatpush1.bf16.msra.mxu0 0
    %115 = vmatprep.subr.bf16.mxu0 0
    %116 = vmatpush1.bf16.msra.mxu0 0
    %117 = vmatprep.subr.bf16.mxu0 0
    %118 = vmatpush1.bf16.msra.mxu0 0
    %119 = vmatprep.subr.bf16.mxu0 0
    %120 = vmatpush1.bf16.msra.mxu0 0
    %121 = vmatprep.subr.bf16.mxu0 0
    %122 = vmatpush1.bf16.msra.mxu0 0
    %123 = vmatprep.subr.bf16.mxu0 0
    %124 = vmatpush1.bf16.msra.mxu0 0
    %125 = vmatprep.subr.bf16.mxu0 0
    %126 = vmatpush1.bf16.msra.mxu0 0
    %127 = vmatprep.subr.bf16.mxu0 0
    %128 = vmatpush1.bf16.msra.mxu0 0
    %129 = vmatprep.subr.bf16.mxu0 0
    %130 = vmatpush1.bf16.msra.mxu0 0
    %131 = vmatprep.mubr.bf16.mxu0 0
    %132 = vmatmul.mubr.bf16.gmra.mrb[0].mxu0 %v97
    %v133 = vpop.f32.mrb[0].mxu0
    %v134 = vadd.f32 %v78, %v133
    %v135 = vpop.f32.mrb[0].mxu0
    %v136 = vpop.f32.mrb[0].mxu0
    %v137 = vpop.f32.mrb[0].mxu0
    %138 = vdwg.mxu0
    %v139 = vld [vmem:[%s4] sm:$0x1]
    %v141 = vlaneseq
    %v142 = vshrl.u32 %v141, 7
    %v143 = vsub.s32 0, %v142
    %v144 = vrot.slane %v139, %v143
    %v146 = vadd.f32 %v134, %v144
    %v147 = vmax.f32 %v146, 0.0
    %v148 = vpack.c.bf16 %v147, %v147
    %v149 = vld [vmem:[%s5] sm:$0xf]
    %v150 = vld [vmem:[%s5 + $0x4] sm:$0xf]
    %v151 = vld [vmem:[%s5 + $0x8] sm:$0xf]
    %v152 = vld [vmem:[%s5 + $0xc] sm:$0xf]
    %v153 = vld [vmem:[%s5 + $0x10] sm:$0xf]
    %v154 = vld [vmem:[%s5 + $0x14] sm:$0xf]
    %v155 = vld [vmem:[%s5 + $0x18] sm:$0xf]
    %v156 = vld [vmem:[%s5 + $0x1c] sm:$0xf]
    %v157 = vld [vmem:[%s5 + $0x20] sm:$0xf]
    %v158 = vld [vmem:[%s5 + $0x24] sm:$0xf]
    %v159 = vld [vmem:[%s5 + $0x28] sm:$0xf]
    %v160 = vld [vmem:[%s5 + $0x2c] sm:$0xf]
    %v161 = vld [vmem:[%s5 + $0x30] sm:$0xf]
    %v162 = vld [vmem:[%s5 + $0x34] sm:$0xf]
    %v163 = vld [vmem:[%s5 + $0x38] sm:$0xf]
    %v164 = vld [vmem:[%s5 + $0x3c] sm:$0xf]
    %v165 = vld [vmem:[%s6] sm:$0x1]
    %v167 = vlaneseq
    %v168 = vshrl.u32 %v167, 7
    %v169 = vsub.s32 0, %v168
    %v170 = vrot.slane %v165, %v169
    %v188 = vunpack.c.l.b16 %v149
    %v189 = vunpack.c.l.b16 %v150
    %v190 = vunpack.c.l.b16 %v151
    %v191 = vunpack.c.l.b16 %v152
    %v192 = vunpack.c.l.b16 %v153
    %v193 = vunpack.c.l.b16 %v154
    %v194 = vunpack.c.l.b16 %v155
    %v195 = vunpack.c.l.b16 %v156
    %v196 = vunpack.c.l.b16 %v157
    %v197 = vunpack.c.l.b16 %v158
    %v198 = vunpack.c.l.b16 %v159
    %v199 = vunpack.c.l.b16 %v160
    %v200 = vunpack.c.l.b16 %v161
    %v201 = vunpack.c.l.b16 %v162
    %v202 = vunpack.c.l.b16 %v163
    %v203 = vunpack.c.l.b16 %v164
    %v204 = vpack.c.b16 %v189, %v188
    %v205 = vpack.c.b16 %v191, %v190
    %v206 = vpack.c.b16 %v193, %v192
    %v207 = vpack.c.b16 %v195, %v194
    %v208 = vpack.c.b16 %v197, %v196
    %v209 = vpack.c.b16 %v199, %v198
    %v210 = vpack.c.b16 %v201, %v200
    %v211 = vpack.c.b16 %v203, %v202
    %220 = vmatprep.subr.bf16.mxu0 0
    %221 = vmatpush1.bf16.msra.mxu0 %v204
    %222 = vmatprep.subr.bf16.mxu0 0
    %223 = vmatpush1.bf16.msra.mxu0 %v205
    %224 = vmatprep.subr.bf16.mxu0 0
    %225 = vmatpush1.bf16.msra.mxu0 %v206
    %226 = vmatprep.subr.bf16.mxu0 0
    %227 = vmatpush1.bf16.msra.mxu0 %v207
    %228 = vmatprep.subr.bf16.mxu0 0
    %229 = vmatpush1.bf16.msra.mxu0 %v208
    %230 = vmatprep.subr.bf16.mxu0 0
    %231 = vmatpush1.bf16.msra.mxu0 %v209
    %232 = vmatprep.subr.bf16.mxu0 0
    %233 = vmatpush1.bf16.msra.mxu0 %v210
    %234 = vmatprep.subr.bf16.mxu0 0
    %235 = vmatpush1.bf16.msra.mxu0 %v211
    %236 = vmatprep.subr.bf16.mxu0 0
    %237 = vmatpush1.bf16.msra.mxu0 0
    %238 = vmatprep.subr.bf16.mxu0 0
    %239 = vmatpush1.bf16.msra.mxu0 0
    %240 = vmatprep.subr.bf16.mxu0 0
    %241 = vmatpush1.bf16.msra.mxu0 0
    %242 = vmatprep.subr.bf16.mxu0 0
    %243 = vmatpush1.bf16.msra.mxu0 0
    %244 = vmatprep.subr.bf16.mxu0 0
    %245 = vmatpush1.bf16.msra.mxu0 0
    %246 = vmatprep.subr.bf16.mxu0 0
    %247 = vmatpush1.bf16.msra.mxu0 0
    %248 = vmatprep.subr.bf16.mxu0 0
    %249 = vmatpush1.bf16.msra.mxu0 0
    %250 = vmatprep.subr.bf16.mxu0 0
    %251 = vmatpush1.bf16.msra.mxu0 0
    %252 = vmatprep.mubr.bf16.mxu0 0
    %253 = vmatmul.mubr.bf16.gmra.mrb[0].mxu0 %v148
    %v254 = vpop.f32.mrb[0].mxu0
    %v255 = vadd.f32 %v170, %v254
    %v256 = vpop.f32.mrb[0].mxu0
    %v257 = vpop.f32.mrb[0].mxu0
    %v258 = vpop.f32.mrb[0].mxu0
    %259 = vdwg.mxu0
    %260 = vst.msk [vmem:[#allocation2] sm:$0xff] %vm95, %v255
    // Predicated region
    $region30: #{tpu_custom_call.1} parent=1 // pred_check
      _
    $region31: #{tpu_custom_call.1} parent=1 // pred_check_branch
      %262 = sbr.rel (0) target = $region33
    $region32: #{tpu_custom_call.1} parent=1 // pred_region
      %s264 = ssub.s32 128, 128
      %265 = vsyncadd [#allocation3], %s264
      %s267 = sshll.u32 [#allocation2], 4
      %s268 = int_to_ptr.vmem [resolvable:$true] %s267
      %270 = dma.vmem_to_hbm [thread:$0]  %s268, 128, %s7, [#allocation3]
    $region33: #{tpu_custom_call.1} parent=1 // pred_fallthru
      _
    // Predicated region
    $region34: #{tpu_custom_call.1} parent=1 // pred_check
      _
    $region35: #{tpu_custom_call.1} parent=1 // pred_check_branch
      %272 = sbr.rel (0) target = $region37
    $region36: #{tpu_custom_call.1} parent=1 // pred_region
      %273 = dma.done [#allocation3], 128
    $region37: #{tpu_custom_call.1} parent=1 // pred_fallthru
      _
    %274 = vsyncpa [#allocation3], 1

</llo_original>
